<compile_context>
chip_gen: v7x
topology: tpu7x:2x2x1
jax: 0.10.0
libtpu: 0.0.40
codegen_flags: <defaults>
</compile_context>

<pallas_src>
import functools

import jax
import jax.numpy as jnp
from jax.experimental import pallas as pl
from jax.experimental.pallas import tpu as pltpu


# ----------------------------------------------------------------------------
# Kernel: one GRU time-step per grid iteration, hidden state in VMEM scratch.
# ----------------------------------------------------------------------------
def _gru_seq_kernel(
    tok_ref,        # SMEM (T,) int32 tokens (scalar prefetch; used by index_maps)
    emb_ref,        # VMEM (1, 1, H) gathered embedding row for this step
    h0_ref,         # VMEM (1, H) initial hidden state
    wi_ref,         # VMEM (H, 3H) fused input->gates weights  (cols: r | z | n)
    wh_ref,         # VMEM (H, 3H) fused hidden->gates weights (cols: r | z | n)
    bi_ref,         # VMEM (1, 3H) fused input biases
    bh_ref,         # VMEM (1, 3H) fused hidden biases
    out_ref,        # VMEM (1, 1, H) output (== hidden after this step)
    h_scratch,      # VMEM (1, H) f32 carried hidden state
):
    t = pl.program_id(0)
    H = h_scratch.shape[-1]

    @pl.when(t == 0)
    def _():
        h_scratch[...] = h0_ref[...].astype(jnp.float32)

    x = emb_ref[0].astype(jnp.float32)      # (1, H)
    h = h_scratch[...]                      # (1, H) f32

    # Two fused MXU matmuls instead of six tiny ones.
    gx = jnp.dot(x, wi_ref[...], preferred_element_type=jnp.float32) + bi_ref[...]
    gh = jnp.dot(h, wh_ref[...], preferred_element_type=jnp.float32) + bh_ref[...]

    # PyTorch GRU cell semantics (gate order r, z, n):
    #   r  = sigmoid(W_ir x + b_ir + W_hr h + b_hr)
    #   z  = sigmoid(W_iz x + b_iz + W_hz h + b_hz)
    #   n  = tanh  (W_in x + b_in + r * (W_hn h + b_hn))
    #   h' = (1 - z) * n + z * h
    r = jax.nn.sigmoid(gx[:, 0:H] + gh[:, 0:H])
    z = jax.nn.sigmoid(gx[:, H:2 * H] + gh[:, H:2 * H])
    n = jnp.tanh(gx[:, 2 * H:3 * H] + r * gh[:, 2 * H:3 * H])
    h_new = (1.0 - z) * n + z * h

    h_scratch[...] = h_new
    out_ref[0] = h_new.astype(out_ref.dtype)


# ----------------------------------------------------------------------------
# Parameter construction / one-time preparation.
# ----------------------------------------------------------------------------
def make_encoder_rnn_params(key, input_size, hidden_size, dtype=jnp.float32):
    """Parameter init mimicking PyTorch's default init shapes (raw layout)."""
    H = hidden_size
    keys = jax.random.split(key, 5)
    emb = jax.random.normal(keys[0], (input_size, H), dtype=dtype)        # N(0,1)
    bound = 1.0 / (H ** 0.5)
    w_ih = jax.random.uniform(keys[1], (3 * H, H), dtype, -bound, bound)  # (3H,H)
    w_hh = jax.random.uniform(keys[2], (3 * H, H), dtype, -bound, bound)  # (3H,H)
    b_ih = jax.random.uniform(keys[3], (3 * H,), dtype, -bound, bound)
    b_hh = jax.random.uniform(keys[4], (3 * H,), dtype, -bound, bound)
    return dict(emb=emb, w_ih=w_ih, w_hh=w_hh, b_ih=b_ih, b_hh=b_hh)


def prepare_encoder_params(params):
    """One-time prep: fuse/transposé weights so per-call path does no reshuffling."""
    emb = params["emb"]
    V, H = emb.shape
    return dict(
        emb3=emb.reshape(V, 1, H),             # (V,1,H): row gather via BlockSpec
        w_i=jnp.asarray(params["w_ih"]).T,     # (H, 3H), columns r|z|n
        w_h=jnp.asarray(params["w_hh"]).T,     # (H, 3H)
        b_i=params["b_ih"].reshape(1, 3 * H),  # (1, 3H)
        b_h=params["b_hh"].reshape(1, 3 * H),  # (1, 3H)
    )


# ----------------------------------------------------------------------------
# pallas_call wrapper: whole sequence in a single kernel launch.
# ----------------------------------------------------------------------------
def _build_sequence_call(T, H, out_dtype):
    grid_spec = pltpu.PrefetchScalarGridSpec(
        num_scalar_prefetch=1,          # tokens -> SMEM, feed the emb index_map
        grid=(T,),
        in_specs=[
            # Gather exactly one embedding row per step (no full-table DMA).
            pl.BlockSpec((1, 1, H), lambda t, tok_ref: (tok_ref[t], 0, 0)),
            # Everything below is resident: constant block index => DMA'd once.
            pl.BlockSpec((1, H), lambda t, tok_ref: (0, 0)),       # h0
            pl.BlockSpec((H, 3 * H), lambda t, tok_ref: (0, 0)),   # W_i fused
            pl.BlockSpec((H, 3 * H), lambda t, tok_ref: (0, 0)),   # W_h fused
            pl.BlockSpec((1, 3 * H), lambda t, tok_ref: (0, 0)),   # b_i fused
            pl.BlockSpec((1, 3 * H), lambda t, tok_ref: (0, 0)),   # b_h fused
        ],
        out_specs=pl.BlockSpec((1, 1, H), lambda t, tok_ref: (t, 0, 0)),
        scratch_shapes=[pltpu.VMEM((1, H), jnp.float32)],          # carried hidden
    )
    return pl.pallas_call(
        _gru_seq_kernel,
        out_shape=jax.ShapeDtypeStruct((T, 1, H), out_dtype),
        grid_spec=grid_spec,
        compiler_params=pltpu.CompilerParams(
            dimension_semantics=("arbitrary",)),   # time axis carries state
    )


@jax.jit
def encoder_rnn_encode_sequence(tokens, hidden, prepared):
    """Run T GRU steps in one kernel.

    tokens: (T,) int tokens; hidden: (1, 1, H) initial hidden state.
    Returns (outputs (T, 1, H), final hidden (1, 1, H)).
    """
    emb3 = prepared["emb3"]
    V, _, H = emb3.shape
    T = tokens.shape[0]
    tok = jnp.clip(tokens.astype(jnp.int32), 0, V - 1)   # OOB-gather safety
    h0 = hidden.reshape(1, H)

    outs = _build_sequence_call(T, H, hidden.dtype)(
        tok, emb3, h0,
        prepared["w_i"], prepared["w_h"], prepared["b_i"], prepared["b_h"])
    return outs, outs[T - 1:T]   # output[t] == hidden after step t


def encoder_rnn_forward(token, hidden, prepared):
    """Single-step forward matching the PyTorch module: (output, hidden), each (1,1,H)."""
    H = hidden.shape[-1]
    outs, h_new = encoder_rnn_encode_sequence(token.reshape(1), hidden, prepared)
    return outs.reshape(1, 1, H), h_new.reshape(1, 1, H)


# ----------------------------------------------------------------------------
# Pure-JAX reference (from the raw PyTorch-layout params) for correctness.
# ----------------------------------------------------------------------------
def _reference_step(token, hidden, params):
    H = params["emb"].shape[1]
    x = params["emb"][token[0]].reshape(1, H)
    h = hidden.reshape(1, H)
    gx = x @ params["w_ih"].T + params["b_ih"]
    gh = h @ params["w_hh"].T + params["b_hh"]
    r = jax.nn.sigmoid(gx[:, :H] + gh[:, :H])
    z = jax.nn.sigmoid(gx[:, H:2 * H] + gh[:, H:2 * H])
    n = jnp.tanh(gx[:, 2 * H:] + r * gh[:, 2 * H:])
    h_new = (1.0 - z) * n + z * h
    return h_new.reshape(1, 1, H), h_new.reshape(1, 1, H)


if __name__ == "__main__":
    input_size = 10    # vocab size
    hidden_size = 32
    seq_len = 8

    key = jax.random.PRNGKey(0)
    k_params, k_tok = jax.random.split(key, 2)

    params = make_encoder_rnn_params(k_params, input_size, hidden_size)
    prepared = prepare_encoder_params(params)

    tokens = jax.random.randint(k_tok, (seq_len,), 0, input_size, dtype=jnp.int32)
    hidden0 = jnp.zeros((1, 1, hidden_size), dtype=jnp.float32)   # initHidden()

    # --- single-step forward (module semantics) ---
    out1, h1 = encoder_rnn_forward(tokens[0:1], hidden0, prepared)
    out1 = jax.block_until_ready(out1)
    h1 = jax.block_until_ready(h1)
    ref_out1, ref_h1 = _reference_step(tokens[0:1], hidden0, params)
    assert out1.shape == (1, 1, hidden_size) and h1.shape == (1, 1, hidden_size)
    assert jnp.allclose(out1, ref_out1, atol=1e-5, rtol=1e-5)
    assert jnp.allclose(h1, ref_h1, atol=1e-5, rtol=1e-5)

    # --- full sequence in one pallas_call ---
    outs, h_final = encoder_rnn_encode_sequence(tokens, hidden0, prepared)
    outs = jax.block_until_ready(outs)
    h_final = jax.block_until_ready(h_final)

    ref_h = hidden0
    ref_outs = []
    for t in range(seq_len):
        ref_o, ref_h = _reference_step(tokens[t:t + 1], ref_h, params)
        ref_outs.append(ref_o)
    ref_outs = jnp.concatenate(ref_outs, axis=0)   # (T, 1, H)

    assert outs.shape == (seq_len, 1, hidden_size)
    assert h_final.shape == (1, 1, hidden_size)
    assert jnp.allclose(outs, ref_outs, atol=1e-5, rtol=1e-5)
    assert jnp.allclose(h_final, ref_h, atol=1e-5, rtol=1e-5)

    print("KERNEL_OK")
</pallas_src>

<mosaic_0001>
module attributes {stable_mosaic.version = 11 : i64} {
  func.func @_gru_seq_kernel(%arg0: i32, %arg1: memref<1xi32, #tpu.memory_space<smem>>, %arg2: memref<1x1x32xf32, #tpu.memory_space<vmem>>, %arg3: memref<1x32xf32, #tpu.memory_space<vmem>>, %arg4: memref<32x96xf32, #tpu.memory_space<vmem>>, %arg5: memref<32x96xf32, #tpu.memory_space<vmem>>, %arg6: memref<1x96xf32, #tpu.memory_space<vmem>>, %arg7: memref<1x96xf32, #tpu.memory_space<vmem>>, %arg8: memref<1x1x32xf32, #tpu.memory_space<vmem>>, %arg9: memref<1x32xf32, #tpu.memory_space<vmem>>) attributes {dimension_semantics = [#tpu.dimension_semantics<arbitrary>], iteration_bounds = array<i64: 1>, scalar_prefetch = 1 : i64, scratch_operands = 1 : i64, tpu.core_type = #tpu.core_type<tc>, window_params = [{transform_indices = @transform_0, window_bounds = array<i64: 1, 1, 32>}, {pipeline_mode = #tpu.pipeline_mode<synchronous>, transform_indices = @transform_1, window_bounds = array<i64: 1, 32>}, {pipeline_mode = #tpu.pipeline_mode<synchronous>, transform_indices = @transform_2, window_bounds = array<i64: 32, 96>}, {pipeline_mode = #tpu.pipeline_mode<synchronous>, transform_indices = @transform_3, window_bounds = array<i64: 32, 96>}, {pipeline_mode = #tpu.pipeline_mode<synchronous>, transform_indices = @transform_4, window_bounds = array<i64: 1, 96>}, {pipeline_mode = #tpu.pipeline_mode<synchronous>, transform_indices = @transform_5, window_bounds = array<i64: 1, 96>}, {transform_indices = @transform_6, window_bounds = array<i64: 1, 1, 32>}]} {
    %c0_i32 = arith.constant 0 : i32
    %0 = arith.cmpi eq, %arg0, %c0_i32 : i32
    %1 = arith.extui %0 : i1 to i32
    %c0_i32_0 = arith.constant 0 : i32
    %2 = arith.cmpi ne, %1, %c0_i32_0 : i32
    scf.if %2 {
      %c0_22 = arith.constant 0 : index
      %c0_23 = arith.constant 0 : index
      %44 = vector.load %arg3[%c0_22, %c0_23] : memref<1x32xf32, #tpu.memory_space<vmem>>, vector<1x32xf32>
      %c0_24 = arith.constant 0 : index
      %c0_25 = arith.constant 0 : index
      %45 = vector.load %arg9[%c0_24, %c0_25] : memref<1x32xf32, #tpu.memory_space<vmem>>, vector<1x32xf32>
      tpu.vector_store %arg9[%c0_24, %c0_25], %44 {strides = array<i32>} : memref<1x32xf32, #tpu.memory_space<vmem>>, vector<1x32xf32>,
    } else {
    }
    %c0 = arith.constant 0 : index
    %c0_1 = arith.constant 0 : index
    %c0_2 = arith.constant 0 : index
    %3 = vector.load %arg2[%c0, %c0_1, %c0_2] : memref<1x1x32xf32, #tpu.memory_space<vmem>>, vector<1x1x32xf32>
    %4 = vector.shape_cast %3 : vector<1x1x32xf32> to vector<1x32xf32>
    %c0_3 = arith.constant 0 : index
    %c0_4 = arith.constant 0 : index
    %5 = vector.load %arg9[%c0_3, %c0_4] : memref<1x32xf32, #tpu.memory_space<vmem>>, vector<1x32xf32>
    %c0_5 = arith.constant 0 : index
    %c0_6 = arith.constant 0 : index
    %6 = vector.load %arg4[%c0_5, %c0_6] : memref<32x96xf32, #tpu.memory_space<vmem>>, vector<32x96xf32>
    %cst = arith.constant dense<0.000000e+00> : vector<1x96xf32>
    %7 = tpu.matmul %4, %6, %cst {dimension_numbers = #tpu.dot_dimension_numbers<[1], [0], [0], [1], [0, 0, 1, 1], [], []>} : vector<1x32xf32>, vector<32x96xf32>, vector<1x96xf32> -> vector<1x96xf32>
    %c0_7 = arith.constant 0 : index
    %c0_8 = arith.constant 0 : index
    %8 = vector.load %arg6[%c0_7, %c0_8] : memref<1x96xf32, #tpu.memory_space<vmem>>, vector<1x96xf32>
    %9 = arith.addf %7, %8 : vector<1x96xf32>
    %c0_9 = arith.constant 0 : index
    %c0_10 = arith.constant 0 : index
    %10 = vector.load %arg5[%c0_9, %c0_10] : memref<32x96xf32, #tpu.memory_space<vmem>>, vector<32x96xf32>
    %cst_11 = arith.constant dense<0.000000e+00> : vector<1x96xf32>
    %11 = tpu.matmul %5, %10, %cst_11 {dimension_numbers = #tpu.dot_dimension_numbers<[1], [0], [0], [1], [0, 0, 1, 1], [], []>} : vector<1x32xf32>, vector<32x96xf32>, vector<1x96xf32> -> vector<1x96xf32>
    %c0_12 = arith.constant 0 : index
    %c0_13 = arith.constant 0 : index
    %12 = vector.load %arg7[%c0_12, %c0_13] : memref<1x96xf32, #tpu.memory_space<vmem>>, vector<1x96xf32>
    %13 = arith.addf %11, %12 : vector<1x96xf32>
    %14 = vector.extract_strided_slice %9 {offsets = [0, 0], sizes = [1, 32], strides = [1, 1]} : vector<1x96xf32> to vector<1x32xf32>
    %15 = vector.extract_strided_slice %13 {offsets = [0, 0], sizes = [1, 32], strides = [1, 1]} : vector<1x96xf32> to vector<1x32xf32>
    %16 = arith.addf %14, %15 : vector<1x32xf32>
    %17 = arith.negf %16 : vector<1x32xf32>
    %18 = math.exp %17 : vector<1x32xf32>
    %cst_14 = arith.constant 1.000000e+00 : f32
    %19 = vector.broadcast %cst_14 : f32 to vector<1x32xf32>
    %20 = arith.addf %19, %18 : vector<1x32xf32>
    %21 = arith.divf %19, %20 : vector<1x32xf32>
    %22 = vector.extract_strided_slice %9 {offsets = [0, 32], sizes = [1, 32], strides = [1, 1]} : vector<1x96xf32> to vector<1x32xf32>
    %23 = vector.extract_strided_slice %13 {offsets = [0, 32], sizes = [1, 32], strides = [1, 1]} : vector<1x96xf32> to vector<1x32xf32>
    %24 = arith.addf %22, %23 : vector<1x32xf32>
    %25 = arith.negf %24 : vector<1x32xf32>
    %26 = math.exp %25 : vector<1x32xf32>
    %cst_15 = arith.constant 1.000000e+00 : f32
    %27 = vector.broadcast %cst_15 : f32 to vector<1x32xf32>
    %28 = arith.addf %27, %26 : vector<1x32xf32>
    %29 = arith.divf %27, %28 : vector<1x32xf32>
    %30 = vector.extract_strided_slice %9 {offsets = [0, 64], sizes = [1, 32], strides = [1, 1]} : vector<1x96xf32> to vector<1x32xf32>
    %31 = vector.extract_strided_slice %13 {offsets = [0, 64], sizes = [1, 32], strides = [1, 1]} : vector<1x96xf32> to vector<1x32xf32>
    %32 = arith.mulf %21, %31 : vector<1x32xf32>
    %33 = arith.addf %30, %32 : vector<1x32xf32>
    %34 = math.tanh %33 : vector<1x32xf32>
    %cst_16 = arith.constant 1.000000e+00 : f32
    %35 = vector.broadcast %cst_16 : f32 to vector<1x32xf32>
    %36 = arith.subf %35, %29 : vector<1x32xf32>
    %37 = arith.mulf %36, %34 : vector<1x32xf32>
    %38 = arith.mulf %29, %5 : vector<1x32xf32>
    %39 = arith.addf %37, %38 : vector<1x32xf32>
    %c0_17 = arith.constant 0 : index
    %c0_18 = arith.constant 0 : index
    %40 = vector.load %arg9[%c0_17, %c0_18] : memref<1x32xf32, #tpu.memory_space<vmem>>, vector<1x32xf32>
    tpu.vector_store %arg9[%c0_17, %c0_18], %39 {strides = array<i32>} : memref<1x32xf32, #tpu.memory_space<vmem>>, vector<1x32xf32>,
    %c0_19 = arith.constant 0 : index
    %c0_20 = arith.constant 0 : index
    %c0_21 = arith.constant 0 : index
    %41 = vector.load %arg8[%c0_19, %c0_20, %c0_21] : memref<1x1x32xf32, #tpu.memory_space<vmem>>, vector<1x1x32xf32>
    %42 = vector.shape_cast %41 : vector<1x1x32xf32> to vector<1x32xf32>
    %43 = vector.shape_cast %39 : vector<1x32xf32> to vector<1x1x32xf32>
    tpu.vector_store %arg8[%c0_19, %c0_20, %c0_21], %43 {strides = array<i32>} : memref<1x1x32xf32, #tpu.memory_space<vmem>>, vector<1x1x32xf32>,
    return
  }
  func.func @transform_0(%arg0: i32, %arg1: memref<1xi32, #tpu.memory_space<smem>>) -> (i32, i32, i32) {
    %0 = arith.index_cast %arg0 : i32 to index
    %1 = memref.load %arg1[%0] : memref<1xi32, #tpu.memory_space<smem>>
    %c0_i32 = arith.constant 0 : i32
    %c0_i32_0 = arith.constant 0 : i32
    %c0_i32_1 = arith.constant 0 : i32
    return %1, %c0_i32, %c0_i32_0 : i32, i32, i32
  }
  func.func @transform_1(%arg0: i32, %arg1: memref<1xi32, #tpu.memory_space<smem>>) -> (i32, i32) {
    %c0_i32 = arith.constant 0 : i32
    %c0_i32_0 = arith.constant 0 : i32
    %c0_i32_1 = arith.constant 0 : i32
    return %c0_i32, %c0_i32_0 : i32, i32
  }
  func.func @transform_2(%arg0: i32, %arg1: memref<1xi32, #tpu.memory_space<smem>>) -> (i32, i32) {
    %c0_i32 = arith.constant 0 : i32
    %c0_i32_0 = arith.constant 0 : i32
    %c0_i32_1 = arith.constant 0 : i32
    return %c0_i32, %c0_i32_0 : i32, i32
  }
  func.func @transform_3(%arg0: i32, %arg1: memref<1xi32, #tpu.memory_space<smem>>) -> (i32, i32) {
    %c0_i32 = arith.constant 0 : i32
    %c0_i32_0 = arith.constant 0 : i32
    %c0_i32_1 = arith.constant 0 : i32
    return %c0_i32, %c0_i32_0 : i32, i32
  }
  func.func @transform_4(%arg0: i32, %arg1: memref<1xi32, #tpu.memory_space<smem>>) -> (i32, i32) {
    %c0_i32 = arith.constant 0 : i32
    %c0_i32_0 = arith.constant 0 : i32
    %c0_i32_1 = arith.constant 0 : i32
    return %c0_i32, %c0_i32_0 : i32, i32
  }
  func.func @transform_5(%arg0: i32, %arg1: memref<1xi32, #tpu.memory_space<smem>>) -> (i32, i32) {
    %c0_i32 = arith.constant 0 : i32
    %c0_i32_0 = arith.constant 0 : i32
    %c0_i32_1 = arith.constant 0 : i32
    return %c0_i32, %c0_i32_0 : i32, i32
  }
  func.func @transform_6(%arg0: i32, %arg1: memref<1xi32, #tpu.memory_space<smem>>) -> (i32, i32, i32) {
    %c0_i32 = arith.constant 0 : i32
    %c0_i32_0 = arith.constant 0 : i32
    %c0_i32_1 = arith.constant 0 : i32
    return %arg0, %c0_i32, %c0_i32_0 : i32, i32, i32
  }
}

</mosaic_0001>

<llo_original>
// kernel: encoder_rnn_encode_sequence.1
$region0: #{encoder_rnn_encode_sequence.1}
  #allocation0 [shape = 'u32[]', space=smem, size = 0x4, offset = 0x4, fixed_abs, tag = 'smem constant byte address 0x4 - core index']
  #allocation1 [shape = 'u32[144,128]{1,0:T(1,128)}', space=vmem, size = 0x12000, scoped, tag = 'internal scratch']
  #allocation2 [shape = 'f32[1,32]{1,0:T(1,128)}', space=vmem, size = 0x200, scoped, tag = 'scratch operand']
  #allocation3 [shape = 's32[1]{0}', space=sflag, size = 0x4, scoped, tag = 'scoped memory for encoder_rnn_encode_sequence.1']
  #allocation4 [shape = 's32[1]{0:T(128)S(6)}', space=smem, size = 0x200, scoped, tag = 'prefetched SMEM operand 0']
  %s0 = inlined_call_operand.<no memory space> [shape: s32[1], index: 0, kind: input, shape index: {}]
  %s1 = inlined_call_operand.hbm [shape: f32[10,1,32], index: 1, kind: input, shape index: {}]
  %s2 = inlined_call_operand.vmem [shape: f32[1,32], index: 2, kind: input, shape index: {}]
  %s3 = inlined_call_operand.vmem [shape: f32[32,96], index: 3, kind: input, shape index: {}]
  %s4 = inlined_call_operand.hbm [shape: f32[32,96], index: 4, kind: input, shape index: {}]
  %s5 = inlined_call_operand.vmem [shape: f32[1,96], index: 5, kind: input, shape index: {}]
  %s6 = inlined_call_operand.hbm [shape: f32[1,96], index: 6, kind: input, shape index: {}]
  %s7 = inlined_call_operand.vmem [shape: f32[1,1,32], index: 7, kind: output, shape index: {}]
  %s8 = sld [smem:[#allocation0]]
  $region50: #{encoder_rnn_encode_sequence.1} parent=0
    _
  %s10 = ssub.s32 1, %s8
  %s11 = scalar_select 0, %s10, %s8
  %12 = sst [smem:[#allocation4]] %s0
  $region1: #{encoder_rnn_encode_sequence.1} parent=0
    #allocation5 [shape = 'u8[512]{0}', space=vmem, size = 0x400, scoped, tag = 'input window, operand 1, single buffered']
    #allocation6 [shape = 's32[1]{0}', space=sflag, size = 0x4, scoped, tag = 'scoped memory for encoder_rnn_encode_sequence.1']
    #allocation7 [shape = 'u8[16384]{0}', space=vmem, size = 0x4000, scoped, tag = 'input window, operand 4, single buffered']
    #allocation8 [shape = 's32[1]{0}', space=sflag, size = 0x4, scoped, tag = 'scoped memory for encoder_rnn_encode_sequence.1']
    #allocation9 [shape = 'u8[512]{0}', space=vmem, size = 0x400, scoped, tag = 'input window, operand 6, single buffered']
    %13 = vsyncpa [#allocation6], 0
    %14 = vsyncpa [#allocation8], 0
    // Predicated region
    $region2: #{encoder_rnn_encode_sequence.1} parent=1 // pred_check
      _
    $region3: #{encoder_rnn_encode_sequence.1} parent=1 // pred_check_branch
      %16 = sbr.rel (0) target = $region5
    $region4: #{encoder_rnn_encode_sequence.1} parent=1 // pred_region
      %s17 = sld [smem:[#allocation4]]
      %s19 = ssub.s32 16, 16
      %20 = vsyncadd [#allocation6], %s19
      %s21 = smul.addr %s17, 16
      %s22 = scalar_lea.hbm %s1, %s21
      %s24 = sshll.u32 [#allocation5], 4
      %s25 = int_to_ptr.vmem [resolvable:$true] %s24
      %27 = dma.hbm_to_vmem [thread:$0]  %s22, 16, %s25, [#allocation6]
    $region5: #{encoder_rnn_encode_sequence.1} parent=1 // pred_fallthru
      _
    // Predicated region
    $region6: #{encoder_rnn_encode_sequence.1} parent=1 // pred_check
      _
    $region7: #{encoder_rnn_encode_sequence.1} parent=1 // pred_check_branch
      %29 = sbr.rel (0) target = $region9
    $region8: #{encoder_rnn_encode_sequence.1} parent=1 // pred_region
      _
    $region9: #{encoder_rnn_encode_sequence.1} parent=1 // pred_fallthru
      _
    // Predicated region
    $region10: #{encoder_rnn_encode_sequence.1} parent=1 // pred_check
      _
    $region11: #{encoder_rnn_encode_sequence.1} parent=1 // pred_check_branch
      %31 = sbr.rel (0) target = $region13
    $region12: #{encoder_rnn_encode_sequence.1} parent=1 // pred_region
      _
    $region13: #{encoder_rnn_encode_sequence.1} parent=1 // pred_fallthru
      _
    // Predicated region
    $region14: #{encoder_rnn_encode_sequence.1} parent=1 // pred_check
      _
    $region15: #{encoder_rnn_encode_sequence.1} parent=1 // pred_check_branch
      %33 = sbr.rel (0) target = $region17
    $region16: #{encoder_rnn_encode_sequence.1} parent=1 // pred_region
      %s35 = ssub.s32 512, 512
      %36 = vsyncadd [#allocation8], %s35
      %s37 = sshll.u32 [#allocation7], 4
      %s38 = int_to_ptr.vmem [resolvable:$true] %s37
      %43 = dma.hbm_to_vmem [thread:$0]  %s4, 512, %s38, [#allocation8], 128, 128, 8
    $region17: #{encoder_rnn_encode_sequence.1} parent=1 // pred_fallthru
      _
    // Predicated region
    $region18: #{encoder_rnn_encode_sequence.1} parent=1 // pred_check
      _
    $region19: #{encoder_rnn_encode_sequence.1} parent=1 // pred_check_branch
      %45 = sbr.rel (0) target = $region21
    $region20: #{encoder_rnn_encode_sequence.1} parent=1 // pred_region
      _
    $region21: #{encoder_rnn_encode_sequence.1} parent=1 // pred_fallthru
      _
    // Predicated region
    $region22: #{encoder_rnn_encode_sequence.1} parent=1 // pred_check
      _
    $region23: #{encoder_rnn_encode_sequence.1} parent=1 // pred_check_branch
      %47 = sbr.rel (0) target = $region25
    $region24: #{encoder_rnn_encode_sequence.1} parent=1 // pred_region
      %s49 = ssub.s32 16, 16
      %50 = vsyncadd [#allocation8], %s49
      %s52 = sshll.u32 [#allocation9], 4
      %s53 = int_to_ptr.vmem [resolvable:$true] %s52
      %55 = dma.hbm_to_vmem [thread:$0]  %s6, 16, %s53, [#allocation8]
    $region25: #{encoder_rnn_encode_sequence.1} parent=1 // pred_fallthru
      _
    // Predicated region
    $region26: #{encoder_rnn_encode_sequence.1} parent=1 // pred_check
      _
    $region27: #{encoder_rnn_encode_sequence.1} parent=1 // pred_check_branch
      %57 = sbr.rel (0) target = $region29
    $region28: #{encoder_rnn_encode_sequence.1} parent=1 // pred_region
      %58 = dma.done [#allocation6], 16
    $region29: #{encoder_rnn_encode_sequence.1} parent=1 // pred_fallthru
      _
    // Predicated region
    $region30: #{encoder_rnn_encode_sequence.1} parent=1 // pred_check
      _
    $region31: #{encoder_rnn_encode_sequence.1} parent=1 // pred_check_branch
      %60 = sbr.rel (0) target = $region33
    $region32: #{encoder_rnn_encode_sequence.1} parent=1 // pred_region
      %61 = dma.done [#allocation8], 512
    $region33: #{encoder_rnn_encode_sequence.1} parent=1 // pred_fallthru
      _
    // Predicated region
    $region34: #{encoder_rnn_encode_sequence.1} parent=1 // pred_check
      _
    $region35: #{encoder_rnn_encode_sequence.1} parent=1 // pred_check_branch
      %63 = sbr.rel (0) target = $region37
    $region36: #{encoder_rnn_encode_sequence.1} parent=1 // pred_region
      %64 = dma.done [#allocation8], 16
    $region37: #{encoder_rnn_encode_sequence.1} parent=1 // pred_fallthru
      _
    %s65 = sld [smem:[#allocation4]]
    %p66 = scmp.eq.s32.totalorder 0, 0
    // Predicated region
    $region38: #{encoder_rnn_encode_sequence.1} parent=1 // pred_check
      %p67 = pneg %p66
    $region39: #{encoder_rnn_encode_sequence.1} parent=1 // pred_check_branch
      %69 = sbr.rel (%p67) target = $region41
    $region40: #{encoder_rnn_encode_sequence.1} parent=1 // pred_region
      %v70 = vld [vmem:[%s2] sm:$0x1]
      %vm71 = vcmask 253952
      %72 = vst.msk [vmem:[#allocation2] sm:$0x1] %vm71, %v70
    $region41: #{encoder_rnn_encode_sequence.1} parent=1 // pred_fallthru
      _
    %v73 = vld [vmem:[#allocation5] sm:$0x1]
    %v74 = vld [vmem:[#allocation2] sm:$0x1]
    %v75 = vld [vmem:[%s3] sm:$0xff]
    %v76 = vld [vmem:[%s3 + $0x8] sm:$0xff]
    %v77 = vld [vmem:[%s3 + $0x10] sm:$0xff]
    %v78 = vld [vmem:[%s3 + $0x18] sm:$0xff]
    %v79 = vld [vmem:[%s5] sm:$0x1]
    %vm80 = vcmask 261120
    %v82 = vsel %vm80, %v73, 0
    %84 = vmatprep.subr.mxu0 0.0
    %85 = vmatpush1.msra.mxu0 %v75
    %86 = vmatprep.subr.mxu0 0.0
    %87 = vmatpush1.msra.mxu0 %v76
    %88 = vmatprep.subr.mxu0 0.0
    %89 = vmatpush1.msra.mxu0 %v77
    %90 = vmatprep.subr.mxu0 0.0
    %91 = vmatpush1.msra.mxu0 %v78
    %92 = vmatprep.subr.mxu0 0.0
    %93 = vmatpush1.msra.mxu0 0.0
    %94 = vmatprep.subr.mxu0 0.0
    %95 = vmatpush1.msra.mxu0 0.0
    %96 = vmatprep.subr.mxu0 0.0
    %97 = vmatpush1.msra.mxu0 0.0
    %98 = vmatprep.subr.mxu0 0.0
    %99 = vmatpush1.msra.mxu0 0.0
    %100 = vmatprep.subr.mxu0 0.0
    %101 = vmatpush1.msra.mxu0 0.0
    %102 = vmatprep.subr.mxu0 0.0
    %103 = vmatpush1.msra.mxu0 0.0
    %104 = vmatprep.subr.mxu0 0.0
    %105 = vmatpush1.msra.mxu0 0.0
    %106 = vmatprep.subr.mxu0 0.0
    %107 = vmatpush1.msra.mxu0 0.0
    %108 = vmatprep.subr.mxu0 0.0
    %109 = vmatpush1.msra.mxu0 0.0
    %110 = vmatprep.subr.mxu0 0.0
    %111 = vmatpush1.msra.mxu0 0.0
    %112 = vmatprep.subr.mxu0 0.0
    %113 = vmatpush1.msra.mxu0 0.0
    %114 = vmatprep.subr.mxu0 0.0
    %115 = vmatpush1.msra.mxu0 0.0
    %116 = vmatprep.subr.mxu0 0.0
    %117 = vmatpush1.msra.mxu0 0.0
    %118 = vmatprep.subr.mxu0 0.0
    %119 = vmatpush1.msra.mxu0 0.0
    %120 = vmatprep.subr.mxu0 0.0
    %121 = vmatpush1.msra.mxu0 0.0
    %122 = vmatprep.subr.mxu0 0.0
    %123 = vmatpush1.msra.mxu0 0.0
    %124 = vmatprep.subr.mxu0 0.0
    %125 = vmatpush1.msra.mxu0 0.0
    %126 = vmatprep.subr.mxu0 0.0
    %127 = vmatpush1.msra.mxu0 0.0
    %128 = vmatprep.subr.mxu0 0.0
    %129 = vmatpush1.msra.mxu0 0.0
    %130 = vmatprep.subr.mxu0 0.0
    %131 = vmatpush1.msra.mxu0 0.0
    %132 = vmatprep.subr.mxu0 0.0
    %133 = vmatpush1.msra.mxu0 0.0
    %134 = vmatprep.subr.mxu0 0.0
    %135 = vmatpush1.msra.mxu0 0.0
    %136 = vmatprep.subr.mxu0 0.0
    %137 = vmatpush1.msra.mxu0 0.0
    %138 = vmatprep.subr.mxu0 0.0
    %139 = vmatpush1.msra.mxu0 0.0
    %140 = vmatprep.subr.mxu0 0.0
    %141 = vmatpush1.msra.mxu0 0.0
    %142 = vmatprep.subr.mxu0 0.0
    %143 = vmatpush1.msra.mxu0 0.0
    %144 = vmatprep.subr.mxu0 0.0
    %145 = vmatpush1.msra.mxu0 0.0
    %146 = vmatprep.subr.mxu0 0.0
    %147 = vmatpush1.msra.mxu0 0.0
    %148 = vmatprep.mubr.f32.mxu0 0.0
    %149 = vmatmul.mubr.f32.gmra.mrb[0].mxu0 %v82
    %v150 = vpop.f32.mrb[0].mxu0
    %v151 = vadd.f32 %v79, %v150
    %v152 = vpop.f32.mrb[0].mxu0
    %153 = vdwg.mxu0
    %v154 = vld [vmem:[#allocation7] sm:$0xff]
    %v155 = vld [vmem:[#allocation7 + $0x8] sm:$0xff]
    %v156 = vld [vmem:[#allocation7 + $0x10] sm:$0xff]
    %v157 = vld [vmem:[#allocation7 + $0x18] sm:$0xff]
    %v158 = vld [vmem:[#allocation9] sm:$0x1]
    %v160 = vsel %vm80, %v74, 0
    %162 = vmatprep.subr.mxu0 0.0
    %163 = vmatpush1.msra.mxu0 %v154
    %164 = vmatprep.subr.mxu0 0.0
    %165 = vmatpush1.msra.mxu0 %v155
    %166 = vmatprep.subr.mxu0 0.0
    %167 = vmatpush1.msra.mxu0 %v156
    %168 = vmatprep.subr.mxu0 0.0
    %169 = vmatpush1.msra.mxu0 %v157
    %170 = vmatprep.subr.mxu0 0.0
    %171 = vmatpush1.msra.mxu0 0.0
    %172 = vmatprep.subr.mxu0 0.0
    %173 = vmatpush1.msra.mxu0 0.0
    %174 = vmatprep.subr.mxu0 0.0
    %175 = vmatpush1.msra.mxu0 0.0
    %176 = vmatprep.subr.mxu0 0.0
    %177 = vmatpush1.msra.mxu0 0.0
    %178 = vmatprep.subr.mxu0 0.0
    %179 = vmatpush1.msra.mxu0 0.0
    %180 = vmatprep.subr.mxu0 0.0
    %181 = vmatpush1.msra.mxu0 0.0
    %182 = vmatprep.subr.mxu0 0.0
    %183 = vmatpush1.msra.mxu0 0.0
    %184 = vmatprep.subr.mxu0 0.0
    %185 = vmatpush1.msra.mxu0 0.0
    %186 = vmatprep.subr.mxu0 0.0
    %187 = vmatpush1.msra.mxu0 0.0
    %188 = vmatprep.subr.mxu0 0.0
    %189 = vmatpush1.msra.mxu0 0.0
    %190 = vmatprep.subr.mxu0 0.0
    %191 = vmatpush1.msra.mxu0 0.0
    %192 = vmatprep.subr.mxu0 0.0
    %193 = vmatpush1.msra.mxu0 0.0
    %194 = vmatprep.subr.mxu0 0.0
    %195 = vmatpush1.msra.mxu0 0.0
    %196 = vmatprep.subr.mxu0 0.0
    %197 = vmatpush1.msra.mxu0 0.0
    %198 = vmatprep.subr.mxu0 0.0
    %199 = vmatpush1.msra.mxu0 0.0
    %200 = vmatprep.subr.mxu0 0.0
    %201 = vmatpush1.msra.mxu0 0.0
    %202 = vmatprep.subr.mxu0 0.0
    %203 = vmatpush1.msra.mxu0 0.0
    %204 = vmatprep.subr.mxu0 0.0
    %205 = vmatpush1.msra.mxu0 0.0
    %206 = vmatprep.subr.mxu0 0.0
    %207 = vmatpush1.msra.mxu0 0.0
    %208 = vmatprep.subr.mxu0 0.0
    %209 = vmatpush1.msra.mxu0 0.0
    %210 = vmatprep.subr.mxu0 0.0
    %211 = vmatpush1.msra.mxu0 0.0
    %212 = vmatprep.subr.mxu0 0.0
    %213 = vmatpush1.msra.mxu0 0.0
    %214 = vmatprep.subr.mxu0 0.0
    %215 = vmatpush1.msra.mxu0 0.0
    %216 = vmatprep.subr.mxu0 0.0
    %217 = vmatpush1.msra.mxu0 0.0
    %218 = vmatprep.subr.mxu0 0.0
    %219 = vmatpush1.msra.mxu0 0.0
    %220 = vmatprep.subr.mxu0 0.0
    %221 = vmatpush1.msra.mxu0 0.0
    %222 = vmatprep.subr.mxu0 0.0
    %223 = vmatpush1.msra.mxu0 0.0
    %224 = vmatprep.subr.mxu0 0.0
    %225 = vmatpush1.msra.mxu0 0.0
    %226 = vmatprep.mubr.f32.mxu0 0.0
    %227 = vmatmul.mubr.f32.gmra.mrb[0].mxu0 %v160
    %v228 = vpop.f32.mrb[0].mxu0
    %v229 = vadd.f32 %v158, %v228
    %v230 = vpop.f32.mrb[0].mxu0
    %231 = vdwg.mxu0
    %v232 = vadd.f32 %v151, %v229
    %v233 = vxor.u32 %v232, 2147483648
    %v234 = vmul.f32 %v233, 1.442695
    %v235 = vpow.pop %v234
    %v236 = vadd.f32 %v235, 1.0
    %v237 = vrcp.pop %v236
    %v238 = vmul.f32 1.0, %v237
    %240 = vrot.lane.b32.xlu0 %v229, 64
    %v241 = vpop.permute.xlu0 %240
    %v243 = vmul.f32 %v238, %v241
    %245 = vrot.lane.b32.xlu0 %v243, 64
    %v246 = vpop.permute.xlu0 %245
    %v248 = vadd.f32 %v151, %v246
    %v249 = vtanh.pop %v248
    %v250 = vsub.f32 1.0, %v238
    %252 = vrot.lane.b32.xlu0 %v249, 96
    %v253 = vpop.permute.xlu0 %252
    %v255 = vmul.f32 %v250, %v253
    %v256 = vlaneseq
    %v257 = vshrl.u32 %v256, 7
    %v258 = vsub.s32 0, %v257
    %v259 = vrot.slane %v74, %v258
    %260 = vrot.lane.b32.xlu0 %v259, 32
    %v261 = vpop.permute.xlu0 %260
    %v263 = vmul.f32 %v238, %v261
    %v264 = vadd.f32 %v255, %v263
    %266 = vrot.lane.b32.xlu0 %v264, 96
    %v267 = vpop.permute.xlu0 %266
    %vm269 = vcmask 253952
    %270 = vst.msk [vmem:[#allocation2] sm:$0x1] %vm269, %v267
    %271 = vst.msk [vmem:[%s7] sm:$0x1] %vm269, %v267
    // Predicated region
    $region42: #{encoder_rnn_encode_sequence.1} parent=1 // pred_check
      _
    $region43: #{encoder_rnn_encode_sequence.1} parent=1 // pred_check_branch
      %273 = sbr.rel (0) target = $region45
    $region44: #{encoder_rnn_encode_sequence.1} parent=1 // pred_region
      _
    $region45: #{encoder_rnn_encode_sequence.1} parent=1 // pred_fallthru
      _
    // Predicated region
    $region46: #{encoder_rnn_encode_sequence.1} parent=1 // pred_check
      _
    $region47: #{encoder_rnn_encode_sequence.1} parent=1 // pred_check_branch
      %275 = sbr.rel (0) target = $region49
    $region48: #{encoder_rnn_encode_sequence.1} parent=1 // pred_region
      _
    $region49: #{encoder_rnn_encode_sequence.1} parent=1 // pred_fallthru
      _
    %276 = vsyncpa [#allocation6], 1
    %277 = vsyncpa [#allocation8], 1

</llo_original>
